<compile_context>
chip_gen: v5e
topology: v5e:2x2
jax: 0.10.0
libtpu: 0.0.40
codegen_flags: <defaults>
</compile_context>

<pallas_src>
import functools

import jax
import jax.numpy as jnp
from jax import lax
from jax.experimental import pallas as pl
from jax.experimental.pallas import tpu as pltpu


def _round_up(v, m):
    return (v + m - 1) // m * m


def linear_kernel(x_ref, w_ref, b_ref, o_ref, acc_ref):
    k = pl.program_id(2)

    @pl.when(k == 0)
    def _():
        acc_ref[...] = jnp.zeros_like(acc_ref)

    # x_ref: (tm, tk), w_ref: (tn, tk)  -- contract both on their K axis so the
    # PyTorch [n_out, H] weight layout is used directly (no XLA transpose per call).
    acc_ref[...] += lax.dot_general(
        x_ref[...], w_ref[...],
        dimension_numbers=(((1,), (1,)), ((), ())),
        preferred_element_type=jnp.float32,
    )

    @pl.when(k == pl.num_programs(2) - 1)
    def _():
        # Bias add only once per (i, j) output tile, in f32, then cast + store.
        o_ref[...] = (acc_ref[...] + b_ref[...]).astype(o_ref.dtype)


@functools.partial(jax.jit, static_argnames=("compute_dtype",))
def upper_layer(x, weight, bias, *, compute_dtype=None):
    """y = x @ weight.T + bias, matching torch.nn.Linear semantics.

    x:      [B, H]
    weight: [n_out, H]   (PyTorch convention, used as-is — no transpose)
    bias:   [n_out]
    compute_dtype: optional MXU feed dtype (e.g. jnp.bfloat16 on v6e/v7x);
                   accumulation is always f32, output keeps x.dtype.
    """
    B, H = x.shape
    n_out = weight.shape[0]
    out_dtype = x.dtype

    # Tile sizes: lane/sublane aligned, capped so double-buffered inputs + acc fit
    # comfortably inside v7x's 64 MiB VMEM (and the smaller default scoped limits).
    tm = min(256, _round_up(B, 8))
    tn = min(256, _round_up(n_out, 128))   # lane-dense output tiles (>=128 lanes)
    tk = min(512, _round_up(H, 128))

    B_pad = _round_up(B, tm)
    N_pad = _round_up(n_out, tn)
    K_pad = _round_up(H, tk)

    # Pad once in the wrapper (zeros are exact for the matmul); slice afterwards.
    xp = x if (B_pad == B and K_pad == H) else jnp.pad(
        x, ((0, B_pad - B), (0, K_pad - H)))
    wp = weight if (N_pad == n_out and K_pad == H) else jnp.pad(
        weight, ((0, N_pad - n_out), (0, K_pad - H)))
    bp = (bias if N_pad == n_out else jnp.pad(bias, (0, N_pad - n_out)))
    bp = bp.astype(jnp.float32).reshape(1, N_pad)

    if compute_dtype is not None:
        xp = xp.astype(compute_dtype)
        wp = wp.astype(compute_dtype)

    grid = (B_pad // tm, N_pad // tn, K_pad // tk)

    y_pad = pl.pallas_call(
        linear_kernel,
        out_shape=jax.ShapeDtypeStruct((B_pad, N_pad), out_dtype),
        grid_spec=pltpu.PrefetchScalarGridSpec(
            num_scalar_prefetch=0,
            grid=grid,
            in_specs=[
                pl.BlockSpec((tm, tk), lambda i, j, k: (i, k)),   # x tile
                pl.BlockSpec((tn, tk), lambda i, j, k: (j, k)),   # weight tile [N, K]
                pl.BlockSpec((1, tn), lambda i, j, k: (0, j)),    # bias tile
            ],
            out_specs=pl.BlockSpec((tm, tn), lambda i, j, k: (i, j)),
            scratch_shapes=[pltpu.VMEM((tm, tn), jnp.float32)],
        ),
        compiler_params=pltpu.CompilerParams(
            dimension_semantics=("parallel", "parallel", "arbitrary"),
        ),
    )(xp, wp, bp)

    return y_pad[:B, :n_out]


if __name__ == "__main__":
    # Small shapes consistent with the module: H=32 hidden, n_out=4, batch=8.
    B, H, n_out = 8, 32, 4

    key = jax.random.PRNGKey(0)
    x = jax.random.normal(key, (B, H), dtype=jnp.float32)

    # Deterministic params exactly as in UpperLayer.__init__:
    #   torch.nn.init.ones_(weight), torch.nn.init.zeros_(bias)
    weight = jnp.ones((n_out, H), dtype=jnp.float32)
    bias = jnp.zeros((n_out,), dtype=jnp.float32)

    # f32 feed keeps exact nn.Linear semantics (bf16 feed available via compute_dtype
    # for v6e/v7x throughput when the caller accepts the precision trade-off).
    y = upper_layer(x, weight, bias)
    jax.block_until_ready(y)

    # Reference check (pure JAX) for the forward semantics.
    y_ref = x @ weight.T + bias
    assert y.shape == (B, n_out)
    assert jnp.allclose(y, y_ref, atol=1e-5, rtol=1e-5)

    print("KERNEL_OK")
</pallas_src>

<mosaic_0001>
module attributes {stable_mosaic.version = 11 : i64} {
  func.func @linear_kernel(%arg0: i32, %arg1: i32, %arg2: i32, %arg3: memref<8x128xf32, #tpu.memory_space<vmem>>, %arg4: memref<128x128xf32, #tpu.memory_space<vmem>>, %arg5: memref<1x128xf32, #tpu.memory_space<vmem>>, %arg6: memref<8x128xf32, #tpu.memory_space<vmem>>, %arg7: memref<8x128xf32, #tpu.memory_space<vmem>>) attributes {dimension_semantics = [#tpu.dimension_semantics<parallel>, #tpu.dimension_semantics<parallel>, #tpu.dimension_semantics<arbitrary>], iteration_bounds = array<i64: 1, 1, 1>, scalar_prefetch = 0 : i64, scratch_operands = 1 : i64, tpu.core_type = #tpu.core_type<tc>, window_params = [{transform_indices = @transform_0, window_bounds = array<i64: 8, 128>}, {transform_indices = @transform_1, window_bounds = array<i64: 128, 128>}, {transform_indices = @transform_2, window_bounds = array<i64: 1, 128>}, {transform_indices = @transform_3, window_bounds = array<i64: 8, 128>}]} {
    %c0_i32 = arith.constant 0 : i32
    %0 = arith.cmpi eq, %arg2, %c0_i32 : i32
    %1 = arith.extui %0 : i1 to i32
    %c0_i32_0 = arith.constant 0 : i32
    %2 = arith.cmpi ne, %1, %c0_i32_0 : i32
    scf.if %2 {
      %cst_10 = arith.constant 0.000000e+00 : f32
      %12 = vector.broadcast %cst_10 : f32 to vector<8x128xf32>
      %c0_11 = arith.constant 0 : index
      %c0_12 = arith.constant 0 : index
      %13 = vector.load %arg7[%c0_11, %c0_12] : memref<8x128xf32, #tpu.memory_space<vmem>>, vector<8x128xf32>
      tpu.vector_store %arg7[%c0_11, %c0_12], %12 {strides = array<i32>} : memref<8x128xf32, #tpu.memory_space<vmem>>, vector<8x128xf32>,
    } else {
    }
    %c0 = arith.constant 0 : index
    %c0_1 = arith.constant 0 : index
    %3 = vector.load %arg7[%c0, %c0_1] : memref<8x128xf32, #tpu.memory_space<vmem>>, vector<8x128xf32>
    %c0_2 = arith.constant 0 : index
    %c0_3 = arith.constant 0 : index
    %4 = vector.load %arg3[%c0_2, %c0_3] : memref<8x128xf32, #tpu.memory_space<vmem>>, vector<8x128xf32>
    %c0_4 = arith.constant 0 : index
    %c0_5 = arith.constant 0 : index
    %5 = vector.load %arg4[%c0_4, %c0_5] : memref<128x128xf32, #tpu.memory_space<vmem>>, vector<128x128xf32>
    %cst = arith.constant dense<0.000000e+00> : vector<8x128xf32>
    %6 = tpu.matmul %4, %5, %cst {dimension_numbers = #tpu.dot_dimension_numbers<[1], [1], [0], [0], [0, 0, 1, 0], [], []>} : vector<8x128xf32>, vector<128x128xf32>, vector<8x128xf32> -> vector<8x128xf32>
    %7 = arith.addf %3, %6 : vector<8x128xf32>
    %c0_6 = arith.constant 0 : index
    %c0_7 = arith.constant 0 : index
    %8 = vector.load %arg7[%c0_6, %c0_7] : memref<8x128xf32, #tpu.memory_space<vmem>>, vector<8x128xf32>
    tpu.vector_store %arg7[%c0_6, %c0_7], %7 {strides = array<i32>} : memref<8x128xf32, #tpu.memory_space<vmem>>, vector<8x128xf32>,
    %c0_i32_8 = arith.constant 0 : i32
    %9 = arith.cmpi eq, %arg2, %c0_i32_8 : i32
    %10 = arith.extui %9 : i1 to i32
    %c0_i32_9 = arith.constant 0 : i32
    %11 = arith.cmpi ne, %10, %c0_i32_9 : i32
    scf.if %11 {
      %c0_10 = arith.constant 0 : index
      %c0_11 = arith.constant 0 : index
      %12 = vector.load %arg7[%c0_10, %c0_11] : memref<8x128xf32, #tpu.memory_space<vmem>>, vector<8x128xf32>
      %c0_12 = arith.constant 0 : index
      %c0_13 = arith.constant 0 : index
      %13 = vector.load %arg5[%c0_12, %c0_13] : memref<1x128xf32, #tpu.memory_space<vmem>>, vector<1x128xf32>
      %14 = vector.broadcast %13 : vector<1x128xf32> to vector<8x128xf32>
      %15 = arith.addf %12, %14 : vector<8x128xf32>
      %c0_14 = arith.constant 0 : index
      %c0_15 = arith.constant 0 : index
      %16 = vector.load %arg6[%c0_14, %c0_15] : memref<8x128xf32, #tpu.memory_space<vmem>>, vector<8x128xf32>
      tpu.vector_store %arg6[%c0_14, %c0_15], %15 {strides = array<i32>} : memref<8x128xf32, #tpu.memory_space<vmem>>, vector<8x128xf32>,
    } else {
    }
    return
  }
  func.func @transform_0(%arg0: i32, %arg1: i32, %arg2: i32) -> (i32, i32) {
    %c0_i32 = arith.constant 0 : i32
    return %arg0, %arg2 : i32, i32
  }
  func.func @transform_1(%arg0: i32, %arg1: i32, %arg2: i32) -> (i32, i32) {
    %c0_i32 = arith.constant 0 : i32
    return %arg1, %arg2 : i32, i32
  }
  func.func @transform_2(%arg0: i32, %arg1: i32, %arg2: i32) -> (i32, i32) {
    %c0_i32 = arith.constant 0 : i32
    %c0_i32_0 = arith.constant 0 : i32
    return %c0_i32, %arg1 : i32, i32
  }
  func.func @transform_3(%arg0: i32, %arg1: i32, %arg2: i32) -> (i32, i32) {
    %c0_i32 = arith.constant 0 : i32
    return %arg0, %arg1 : i32, i32
  }
}

</mosaic_0001>

<llo_original>
// kernel: upper_layer.1
$region0: #{upper_layer.1}
  #allocation0 [shape = 'u32[]', space=smem, size = 0x4, offset = 0x4, fixed_abs, tag = 'smem constant byte address 0x4 - core index']
  #allocation1 [shape = 'u32[72,128]{1,0:T(1,128)}', space=vmem, size = 0x9000, scoped, tag = 'internal scratch']
  #allocation2 [shape = 'f32[8,128]{1,0:T(8,128)}', space=vmem, size = 0x1000, scoped, tag = 'scratch operand']
  %s0 = inlined_call_operand.vmem [shape: f32[8,128], index: 0, kind: input, shape index: {}]
  %s1 = inlined_call_operand.vmem [shape: f32[128,128], index: 1, kind: input, shape index: {}]
  %s2 = inlined_call_operand.vmem [shape: f32[1,128], index: 2, kind: input, shape index: {}]
  %s3 = inlined_call_operand.vmem [shape: f32[8,128], index: 3, kind: output, shape index: {}]
  %s4 = sld [smem:[#allocation0]]
  $region30: #{upper_layer.1} parent=0
    _
  %s6 = ssub.s32 1, %s4
  %s7 = scalar_select 0, %s6, %s4
  // Predicated region
  $region2: #{upper_layer.1} parent=0 // pred_check
    _
  $region3: #{upper_layer.1} parent=0 // pred_check_branch
    %9 = sbr.rel (0) target = $region5
  $region4: #{upper_layer.1} parent=0 // pred_region
    _
  $region5: #{upper_layer.1} parent=0 // pred_fallthru
    _
  // Predicated region
  $region6: #{upper_layer.1} parent=0 // pred_check
    _
  $region7: #{upper_layer.1} parent=0 // pred_check_branch
    %11 = sbr.rel (0) target = $region9
  $region8: #{upper_layer.1} parent=0 // pred_region
    _
  $region9: #{upper_layer.1} parent=0 // pred_fallthru
    _
  // Predicated region
  $region10: #{upper_layer.1} parent=0 // pred_check
    _
  $region11: #{upper_layer.1} parent=0 // pred_check_branch
    %13 = sbr.rel (0) target = $region13
  $region12: #{upper_layer.1} parent=0 // pred_region
    _
  $region13: #{upper_layer.1} parent=0 // pred_fallthru
    _
  %p14 = scmp.eq.s32.totalorder 0, 0
  // Predicated region
  $region14: #{upper_layer.1} parent=0 // pred_check
    %p15 = pneg %p14
  $region15: #{upper_layer.1} parent=0 // pred_check_branch
    %17 = sbr.rel (%p15) target = $region17
  $region16: #{upper_layer.1} parent=0 // pred_region
    %18 = vst [vmem:[#allocation2] sm:$0xff] 0.0
  $region17: #{upper_layer.1} parent=0 // pred_fallthru
    _
  %v19 = vld [vmem:[#allocation2] sm:$0xff]
  %v20 = vld [vmem:[%s0] sm:$0xff]
  %v21 = vld [vmem:[%s1] sm:$0xff]
  %v22 = vld [vmem:[%s1 + $0x8] sm:$0xff]
  %v23 = vld [vmem:[%s1 + $0x10] sm:$0xff]
  %v24 = vld [vmem:[%s1 + $0x18] sm:$0xff]
  %v25 = vld [vmem:[%s1 + $0x20] sm:$0xff]
  %v26 = vld [vmem:[%s1 + $0x28] sm:$0xff]
  %v27 = vld [vmem:[%s1 + $0x30] sm:$0xff]
  %v28 = vld [vmem:[%s1 + $0x38] sm:$0xff]
  %v29 = vld [vmem:[%s1 + $0x40] sm:$0xff]
  %v30 = vld [vmem:[%s1 + $0x48] sm:$0xff]
  %v31 = vld [vmem:[%s1 + $0x50] sm:$0xff]
  %v32 = vld [vmem:[%s1 + $0x58] sm:$0xff]
  %v33 = vld [vmem:[%s1 + $0x60] sm:$0xff]
  %v34 = vld [vmem:[%s1 + $0x68] sm:$0xff]
  %v35 = vld [vmem:[%s1 + $0x70] sm:$0xff]
  %v36 = vld [vmem:[%s1 + $0x78] sm:$0xff]
  %37 = vmatpush.xpose.msra.mxu0 %v36
  %38 = vmatpush.xpose.msra.mxu0 %v35
  %39 = vmatpush.xpose.msra.mxu0 %v34
  %40 = vmatpush.xpose.msra.mxu0 %v33
  %41 = vmatpush.xpose.msra.mxu0 %v32
  %42 = vmatpush.xpose.msra.mxu0 %v31
  %43 = vmatpush.xpose.msra.mxu0 %v30
  %44 = vmatpush.xpose.msra.mxu0 %v29
  %45 = vmatpush.xpose.msra.mxu0 %v28
  %46 = vmatpush.xpose.msra.mxu0 %v27
  %47 = vmatpush.xpose.msra.mxu0 %v26
  %48 = vmatpush.xpose.msra.mxu0 %v25
  %49 = vmatpush.xpose.msra.mxu0 %v24
  %50 = vmatpush.xpose.msra.mxu0 %v23
  %51 = vmatpush.xpose.msra.mxu0 %v22
  %52 = vmatpush.xpose.msra.mxu0 %v21
  %53 = vmatmul.f32.gmra.mxu0 %v20
  %v54 = vpop.f32.mrf.mxu0
  %v55 = vadd.f32 0.0, %v54
  %56 = vdwg.mxu0
  %v57 = vadd.f32 %v19, %v55
  %58 = vst [vmem:[#allocation2] sm:$0xff] %v57
  // Predicated region
  $region18: #{upper_layer.1} parent=0 // pred_check
    %p59 = pneg %p14
  $region19: #{upper_layer.1} parent=0 // pred_check_branch
    %61 = sbr.rel (%p59) target = $region21
  $region20: #{upper_layer.1} parent=0 // pred_region
    %v62 = vld [vmem:[#allocation2] sm:$0xff]
    %v63 = vld [vmem:[%s2] sm:$0x1]
    %v65 = vperm.slane %v63, 0
    %v67 = vadd.f32 %v62, %v65
    %68 = vst [vmem:[%s3] sm:$0xff] %v67
  $region21: #{upper_layer.1} parent=0 // pred_fallthru
    _
  // Predicated region
  $region22: #{upper_layer.1} parent=0 // pred_check
    _
  $region23: #{upper_layer.1} parent=0 // pred_check_branch
    %70 = sbr.rel (0) target = $region25
  $region24: #{upper_layer.1} parent=0 // pred_region
    _
  $region25: #{upper_layer.1} parent=0 // pred_fallthru
    _
  // Predicated region
  $region26: #{upper_layer.1} parent=0 // pred_check
    _
  $region27: #{upper_layer.1} parent=0 // pred_check_branch
    %72 = sbr.rel (0) target = $region29
  $region28: #{upper_layer.1} parent=0 // pred_region
    _
  $region29: #{upper_layer.1} parent=0 // pred_fallthru
    _

</llo_original>
